<compile_context>
chip_gen: v7x
topology: tpu7x:2x2x1
jax: 0.10.0
libtpu: 0.0.40
codegen_flags: <defaults>
</compile_context>

<pallas_src>
import functools

import numpy as np
import jax
import jax.numpy as jnp
from jax.experimental import pallas as pl
from jax.experimental.pallas import tpu as pltpu


DTYPE = jnp.bfloat16
VMEM_LIMIT = 40 * 1024 * 1024      # tiles below use <= ~22 MiB; safe on v7x's
                                   # 64 MiB physical VMEM and on v5e/v6e.


# ----------------------------------------------------------------------------
# small helpers
# ----------------------------------------------------------------------------
def _ceil_to(x, m):
    return ((x + m - 1) // m) * m


def _pick_col_tile(dim, pref):
    """Largest tile <= pref that divides `dim` and is 128/256-aligned, or the
    full dim when it is small / has no aligned divisor (full dims are always
    legal block shapes)."""
    if dim <= pref:
        return dim
    for align in (256, 128):
        t = (pref // align) * align
        while t >= align:
            if dim % t == 0:
                return t
            t -= align
    return dim


def _pad2(a, rows, cols):
    r, c = a.shape
    if r == rows and c == cols:
        return a
    return jnp.pad(a, ((0, rows - r), (0, cols - c)))


def _row_plan(S):
    """Single row padding Sp usable by every kernel in the layer stack plus
    the attention q / kv tile sizes."""
    if S <= 512:
        t = _ceil_to(S, 8)
        return t, t, t
    return _ceil_to(S, 512), 256, 128     # Sp, tq, tkv (512 is a multiple of both)


# ----------------------------------------------------------------------------
# Tiled matmul with fused RMSNorm prologue and bias / residual epilogues
# ----------------------------------------------------------------------------
def _mm_kernel(*refs, has_rms, has_bias, has_res, eps):
    idx = 0
    x_ref = refs[idx]; idx += 1
    w_ref = refs[idx]; idx += 1
    rms_ref = bias_ref = res_ref = None
    if has_rms:
        rms_ref = refs[idx]; idx += 1
    if has_bias:
        bias_ref = refs[idx]; idx += 1
    if has_res:
        res_ref = refs[idx]; idx += 1
    o_ref = refs[idx]
    acc_ref = refs[idx + 1]

    @pl.when(pl.program_id(2) == 0)
    def _():
        acc_ref[...] = jnp.zeros(acc_ref.shape, jnp.float32)

    x = x_ref[...]
    if has_rms:                                   # prologue: RMSNorm over full K
        xf = x.astype(jnp.float32)
        var = jnp.mean(xf * xf, axis=-1, keepdims=True)
        xf = xf * jax.lax.rsqrt(var + eps) * rms_ref[...]
        x = xf.astype(x_ref.dtype)
    acc_ref[...] += jnp.dot(x, w_ref[...], preferred_element_type=jnp.float32)

    @pl.when(pl.program_id(2) == pl.num_programs(2) - 1)
    def _():
        out = acc_ref[...]
        if has_bias:
            out = out + bias_ref[...]
        if has_res:
            out = out + res_ref[...].astype(jnp.float32)
        o_ref[...] = out.astype(o_ref.dtype)


def fused_matmul(x, w, b=None, *, residual=None, rms_w=None, rms_eps=1e-6,
                 out_dtype=None, tm_pref=512, tn_pref=1280, tk_pref=1536):
    """epilogue(prologue(x) @ w).  x:(M,K) w:(K,N) b:(N,) residual:(M,N)."""
    M, K = x.shape
    Kw, N = w.shape
    assert K == Kw, (K, Kw)
    out_dtype = out_dtype or x.dtype

    tm = min(tm_pref, _ceil_to(M, 8))
    Mp = _ceil_to(M, tm)
    tn = _pick_col_tile(N, tn_pref)
    has_rms = rms_w is not None
    tk = K if has_rms else _pick_col_tile(K, tk_pref)   # rms needs full K in one step
    gm, gn, gk = Mp // tm, N // tn, K // tk

    xp = x if Mp == M else jnp.pad(x, ((0, Mp - M), (0, 0)))
    inputs = [xp, w]
    in_specs = [pl.BlockSpec((tm, tk), lambda i, j, k: (i, k)),
                pl.BlockSpec((tk, tn), lambda i, j, k: (k, j))]
    if has_rms:
        inputs.append(rms_w.reshape(1, K).astype(jnp.float32))
        in_specs.append(pl.BlockSpec((1, tk), lambda i, j, k: (0, 0)))
    has_bias = b is not None
    if has_bias:
        inputs.append(b.reshape(1, N).astype(jnp.float32))
        in_specs.append(pl.BlockSpec((1, tn), lambda i, j, k: (0, j)))
    has_res = residual is not None
    if has_res:
        rp = residual if Mp == M else jnp.pad(residual, ((0, Mp - M), (0, 0)))
        inputs.append(rp)
        in_specs.append(pl.BlockSpec((tm, tn), lambda i, j, k: (i, j)))

    out = pl.pallas_call(
        functools.partial(_mm_kernel, has_rms=has_rms, has_bias=has_bias,
                          has_res=has_res, eps=rms_eps),
        out_shape=jax.ShapeDtypeStruct((Mp, N), out_dtype),
        grid=(gm, gn, gk),
        in_specs=in_specs,
        out_specs=pl.BlockSpec((tm, tn), lambda i, j, k: (i, j)),
        scratch_shapes=[pltpu.VMEM((tm, tn), jnp.float32)],
        compiler_params=pltpu.CompilerParams(
            dimension_semantics=("parallel", "parallel", "arbitrary"),
            vmem_limit_bytes=VMEM_LIMIT),
    )(*inputs)
    return out if Mp == M else out[:M]


# ----------------------------------------------------------------------------
# Fused RMSNorm + gate/up projections + SiluAndMul (one kernel, two dots)
# ----------------------------------------------------------------------------
def _gate_up_kernel(*refs, has_rms, eps):
    idx = 0
    x_ref = refs[idx]; idx += 1
    wg_ref = refs[idx]; idx += 1
    wu_ref = refs[idx]; idx += 1
    rms_ref = None
    if has_rms:
        rms_ref = refs[idx]; idx += 1
    bg_ref = refs[idx]; idx += 1
    bu_ref = refs[idx]; idx += 1
    o_ref = refs[idx]

    x = x_ref[...]
    if has_rms:
        xf = x.astype(jnp.float32)
        var = jnp.mean(xf * xf, axis=-1, keepdims=True)
        xf = xf * jax.lax.rsqrt(var + eps) * rms_ref[...]
        x = xf.astype(x_ref.dtype)

    g = jnp.dot(x, wg_ref[...], preferred_element_type=jnp.float32) + bg_ref[...]
    u = jnp.dot(x, wu_ref[...], preferred_element_type=jnp.float32) + bu_ref[...]
    o_ref[...] = (g * jax.nn.sigmoid(g) * u).astype(o_ref.dtype)


def fused_gate_up(x, wg, wu, bg, bu, *, rms_w=None, rms_eps=1e-6,
                  out_dtype=None, tm_pref=512, tn_pref=1152):
    M, K = x.shape
    Kw, N = wg.shape
    assert K == Kw and wu.shape == (K, N)
    out_dtype = out_dtype or x.dtype

    tm = min(tm_pref, _ceil_to(M, 8))
    Mp = _ceil_to(M, tm)
    tn = _pick_col_tile(N, tn_pref)
    xp = x if Mp == M else jnp.pad(x, ((0, Mp - M), (0, 0)))

    has_rms = rms_w is not None
    inputs = [xp, wg, wu]
    in_specs = [pl.BlockSpec((tm, K), lambda i, j: (i, 0)),
                pl.BlockSpec((K, tn), lambda i, j: (0, j)),
                pl.BlockSpec((K, tn), lambda i, j: (0, j))]
    if has_rms:
        inputs.append(rms_w.reshape(1, K).astype(jnp.float32))
        in_specs.append(pl.BlockSpec((1, K), lambda i, j: (0, 0)))
    inputs += [bg.reshape(1, N).astype(jnp.float32),
               bu.reshape(1, N).astype(jnp.float32)]
    in_specs += [pl.BlockSpec((1, tn), lambda i, j: (0, j)),
                 pl.BlockSpec((1, tn), lambda i, j: (0, j))]

    out = pl.pallas_call(
        functools.partial(_gate_up_kernel, has_rms=has_rms, eps=rms_eps),
        out_shape=jax.ShapeDtypeStruct((Mp, N), out_dtype),
        grid=(Mp // tm, N // tn),
        in_specs=in_specs,
        out_specs=pl.BlockSpec((tm, tn), lambda i, j: (i, j)),
        compiler_params=pltpu.CompilerParams(
            dimension_semantics=("parallel", "parallel"),
            vmem_limit_bytes=VMEM_LIMIT),
    )(*inputs)
    return out if Mp == M else out[:M]


# ----------------------------------------------------------------------------
# Standalone RMSNorm (only used once, before the patch merger)
# ----------------------------------------------------------------------------
def _rmsnorm_kernel(x_ref, w_ref, o_ref, *, eps):
    x = x_ref[...].astype(jnp.float32)
    var = jnp.mean(x * x, axis=-1, keepdims=True)
    o_ref[...] = (x * jax.lax.rsqrt(var + eps) * w_ref[...]).astype(o_ref.dtype)


def rmsnorm(x, w, eps=1e-6, *, tr_pref=512):
    M, D = x.shape
    tr = min(tr_pref, _ceil_to(M, 8))
    Mp = _ceil_to(M, tr)
    xp = x if Mp == M else jnp.pad(x, ((0, Mp - M), (0, 0)))
    out = pl.pallas_call(
        functools.partial(_rmsnorm_kernel, eps=eps),
        out_shape=jax.ShapeDtypeStruct((Mp, D), x.dtype),
        grid=(Mp // tr,),
        in_specs=[pl.BlockSpec((tr, D), lambda i: (i, 0)),
                  pl.BlockSpec((1, D), lambda i: (0, 0))],
        out_specs=pl.BlockSpec((tr, D), lambda i: (i, 0)),
        compiler_params=pltpu.CompilerParams(
            dimension_semantics=("parallel",),
            vmem_limit_bytes=VMEM_LIMIT),
    )(xp, w.reshape(1, D).astype(jnp.float32))
    return out if Mp == M else out[:M]


# ----------------------------------------------------------------------------
# RoPE (scale folded into q; grid (rows, heads) keeps cos/sin VMEM-resident)
# ----------------------------------------------------------------------------
def _rope_kernel(q_ref, k_ref, cos_ref, sin_ref, oq_ref, ok_ref, *, half, scale):
    cos = cos_ref[...]
    sin = sin_ref[...]      # sign-folded: [-sin, +sin]

    def rot(x):
        xf = x.astype(jnp.float32)
        # TODO(synk): use pltpu.roll when head_dim is a 128-multiple; with
        # head_dim=80/8 the half-roll is done with slice+concat instead.
        rolled = jnp.concatenate([xf[:, half:], xf[:, :half]], axis=-1)
        return xf * cos + rolled * sin

    oq_ref[0] = (rot(q_ref[0]) * scale).astype(oq_ref.dtype)
    ok_ref[0] = rot(k_ref[0]).astype(ok_ref.dtype)


def apply_rope(q, k, cos, sin_signed, scale, t):
    H, Sp, D = q.shape
    half = D // 2
    return pl.pallas_call(
        functools.partial(_rope_kernel, half=half, scale=scale),
        out_shape=(jax.ShapeDtypeStruct((H, Sp, D), q.dtype),
                   jax.ShapeDtypeStruct((H, Sp, D), q.dtype)),
        grid=(Sp // t, H),          # row tile slow -> cos/sin not re-DMA'd per head
        in_specs=[pl.BlockSpec((1, t, D), lambda r, h: (h, r, 0)),
                  pl.BlockSpec((1, t, D), lambda r, h: (h, r, 0)),
                  pl.BlockSpec((t, D), lambda r, h: (r, 0)),
                  pl.BlockSpec((t, D), lambda r, h: (r, 0))],
        out_specs=(pl.BlockSpec((1, t, D), lambda r, h: (h, r, 0)),
                   pl.BlockSpec((1, t, D), lambda r, h: (h, r, 0))),
        compiler_params=pltpu.CompilerParams(
            dimension_semantics=("parallel", "parallel"),
            vmem_limit_bytes=VMEM_LIMIT),
    )(q, k, cos, sin_signed)


# ----------------------------------------------------------------------------
# Flash attention with data-dependent K/V banding (varlen block-diagonal mask)
# ----------------------------------------------------------------------------
def _flash_kernel(kstart_ref, knum_ref, q_ref, k_ref, v_ref, segq_ref, segk_ref,
                  o_ref, m_scr, l_scr, acc_scr):
    qi = pl.program_id(1)
    ki = pl.program_id(2)

    @pl.when(ki == 0)
    def _():
        m_scr[...] = jnp.full(m_scr.shape, -jnp.inf, jnp.float32)
        l_scr[...] = jnp.zeros(l_scr.shape, jnp.float32)
        acc_scr[...] = jnp.zeros(acc_scr.shape, jnp.float32)

    @pl.when(ki < knum_ref[qi])          # skip steps beyond this q-block's band
    def _():
        q = q_ref[0]                                           # (tq, D), scale folded
        k = k_ref[0]
        s = jnp.dot(q, k.T, preferred_element_type=jnp.float32)
        mask = segq_ref[...] == segk_ref[...]                  # (tq,1) == (1,tk)
        s = jnp.where(mask, s, -1e30)
        m_prev = m_scr[...]
        m_new = jnp.maximum(m_prev, jnp.max(s, axis=-1, keepdims=True))
        alpha = jnp.exp(m_prev - m_new)
        p = jnp.exp(s - m_new)
        l_scr[...] = alpha * l_scr[...] + jnp.sum(p, axis=-1, keepdims=True)
        acc_scr[...] = alpha * acc_scr[...] + jnp.dot(
            p.astype(v_ref.dtype), v_ref[0], preferred_element_type=jnp.float32)
        m_scr[...] = m_new

    @pl.when(ki == pl.num_programs(2) - 1)
    def _():
        l = l_scr[...]
        l = jnp.where(l == 0.0, 1.0, l)                        # padded-row guard
        o_ref[0] = (acc_scr[...] * pl.reciprocal(l, approx=True)).astype(o_ref.dtype)


def flash_attention(q, k, v, meta):
    """q,k,v: (H, Sp, D) bf16 (q pre-scaled & roped).  Returns (H, Sp, D)."""
    H, Sp, D = q.shape
    tq, tk = meta["tq"], meta["tk"]
    nq, nk, band = Sp // tq, meta["nk"], meta["band"]

    def kv_block(h, qi, ki, ks, kn):
        return (h, ks[qi] + jnp.minimum(ki, kn[qi] - 1), 0)

    def segk_block(h, qi, ki, ks, kn):
        return (0, ks[qi] + jnp.minimum(ki, kn[qi] - 1))

    return pl.pallas_call(
        _flash_kernel,
        out_shape=jax.ShapeDtypeStruct((H, Sp, D), q.dtype),
        grid_spec=pltpu.PrefetchScalarGridSpec(
            num_scalar_prefetch=2,
            grid=(H, nq, band),
            in_specs=[
                pl.BlockSpec((1, tq, D), lambda h, qi, ki, ks, kn: (h, qi, 0)),
                pl.BlockSpec((1, tk, D), kv_block),
                pl.BlockSpec((1, tk, D), kv_block),
                pl.BlockSpec((tq, 1), lambda h, qi, ki, ks, kn: (qi, 0)),
                pl.BlockSpec((1, tk), segk_block),
            ],
            out_specs=pl.BlockSpec((1, tq, D),
                                   lambda h, qi, ki, ks, kn: (h, qi, 0)),
            scratch_shapes=[pltpu.VMEM((tq, 1), jnp.float32),
                            pltpu.VMEM((tq, 1), jnp.float32),
                            pltpu.VMEM((tq, D), jnp.float32)]),
        compiler_params=pltpu.CompilerParams(
            dimension_semantics=("parallel", "parallel", "arbitrary"),
            vmem_limit_bytes=VMEM_LIMIT),
    )(meta["kstart"], meta["knum"], q, k, v, meta["seg_col"], meta["seg_row"])


def _attn_meta(seg_np, S, Sp, tq, tk):
    """Per-q-block K/V band (kstart, knum) from monotone segment ids."""
    seg = np.asarray(seg_np, np.int32)
    pad_id = (int(seg[-1]) + 1) if S > 0 else 0
    segp = np.concatenate([seg, np.full((Sp - S,), pad_id, np.int32)])
    nq, nk = Sp // tq, Sp // tk
    q_lo = segp[np.arange(nq) * tq]
    q_hi = segp[np.arange(nq) * tq + tq - 1]
    k_lo = segp[np.arange(nk) * tk]
    k_hi = segp[np.arange(nk) * tk + tk - 1]
    kstart = np.searchsorted(k_hi, q_lo, side="left").astype(np.int32)
    kend = (np.searchsorted(k_lo, q_hi, side="right") - 1).astype(np.int32)
    knum = (kend - kstart + 1).astype(np.int32)
    return dict(
        seg_col=jnp.asarray(segp.reshape(Sp, 1)),
        seg_row=jnp.asarray(segp.reshape(1, Sp)),
        kstart=jnp.asarray(kstart),
        knum=jnp.asarray(knum),
        band=int(knum.max()),
        tq=tq, tk=tk, nk=nk)


# ----------------------------------------------------------------------------
# Host-side helpers (numpy) replicating rot_pos_emb / get_window_index
# ----------------------------------------------------------------------------
def rot_pos_emb_np(grid_thw, head_dim, spatial_merge_size, theta=10000.0):
    dim = head_dim // 2
    inv_freq = 1.0 / theta ** (np.arange(0, dim, 2, dtype=np.float32) / dim)
    sms = spatial_merge_size
    pos_ids = []
    for t, h, w in grid_thw:
        hpos = np.broadcast_to(np.arange(h)[:, None], (h, w))
        hpos = hpos.reshape(h // sms, sms, w // sms, sms)
        hpos = hpos.transpose(0, 2, 1, 3).reshape(-1)
        wpos = np.broadcast_to(np.arange(w)[None, :], (h, w))
        wpos = wpos.reshape(h // sms, sms, w // sms, sms)
        wpos = wpos.transpose(0, 2, 1, 3).reshape(-1)
        pid = np.stack([hpos, wpos], axis=-1)
        pos_ids.append(np.tile(pid, (t, 1)))
    pos_ids = np.concatenate(pos_ids, axis=0)
    max_grid = int(np.max(np.asarray(grid_thw)[:, 1:]))
    freqs = np.outer(np.arange(max_grid, dtype=np.float32), inv_freq)
    rpe = freqs[pos_ids]                      # (S, 2, dim//2)
    return rpe.reshape(rpe.shape[0], -1)      # (S, head_dim//2)


def get_window_index_np(grid_thw, window_size, spatial_merge_size, patch_size,
                        spatial_merge_unit):
    window_index = []
    cu_window_seqlens = [0]
    window_index_id = 0
    vws = window_size // spatial_merge_size // patch_size
    for grid_t, grid_h, grid_w in grid_thw:
        lh, lw = grid_h // spatial_merge_size, grid_w // spatial_merge_size
        index = np.arange(grid_t * lh * lw).reshape(grid_t, lh, lw)
        pad_h = vws - lh % vws
        pad_w = vws - lw % vws
        nwh = (lh + pad_h) // vws
        nww = (lw + pad_w) // vws
        ipad = np.pad(index, ((0, 0), (0, pad_h), (0, pad_w)),
                      constant_values=-100)
        ipad = ipad.reshape(grid_t, nwh, vws, nww, vws)
        ipad = ipad.transpose(0, 1, 3, 2, 4).reshape(grid_t, nwh * nww, vws, vws)
        seqlens = (ipad != -100).sum(axis=(2, 3)).reshape(-1)
        ipad = ipad.reshape(-1)
        index_new = ipad[ipad != -100]
        window_index.append(index_new + window_index_id)
        cu_tmp = np.cumsum(seqlens) * spatial_merge_unit + cu_window_seqlens[-1]
        cu_window_seqlens.extend([int(v) for v in cu_tmp])
        window_index_id += int(grid_t * lh * lw)
    return np.concatenate(window_index, axis=0), cu_window_seqlens


def seg_from_cu(cu, seq_len):
    seg = np.zeros(seq_len, dtype=np.int32)
    for i in range(len(cu) - 1):
        seg[int(cu[i]):int(cu[i + 1])] = i
    return seg


# ----------------------------------------------------------------------------
# Parameters
# ----------------------------------------------------------------------------
def init_params(key, cfg):
    hd = cfg["hidden_size"]
    inter = cfg["intermediate_size"]
    in_dim = cfg["in_channels"] * cfg["temporal_patch_size"] * cfg["patch_size"] ** 2
    mh = hd * cfg["spatial_merge_size"] ** 2
    keys = jax.random.split(key, cfg["depth"] + 3)

    def lin(k, i, o, scale=0.02):
        kw, kb = jax.random.split(k)
        return (jax.random.normal(kw, (i, o), jnp.float32) * scale,
                jax.random.normal(kb, (o,), jnp.float32) * scale)

    params = {
        # conv3d weight (embed_dim, C, T, P, P) flattened & transposed -> (in_dim, hd)
        "patch_embed_w": jax.random.normal(keys[0], (in_dim, hd), jnp.float32) * 0.02,
        "blocks": [],
    }
    for li in range(cfg["depth"]):
        ks = jax.random.split(keys[1 + li], 7)
        q_w, q_b = lin(ks[0], hd, hd)
        k_w, k_b = lin(ks[1], hd, hd)
        v_w, v_b = lin(ks[2], hd, hd)
        proj_w, proj_b = lin(ks[3], hd, hd)
        gate_w, gate_b = lin(ks[4], hd, inter)
        up_w, up_b = lin(ks[5], hd, inter)
        down_w, down_b = lin(ks[6], inter, hd)
        params["blocks"].append(dict(
            norm1_w=jnp.ones((hd,), jnp.float32),
            norm2_w=jnp.ones((hd,), jnp.float32),
            q_w=q_w, q_b=q_b, k_w=k_w, k_b=k_b, v_w=v_w, v_b=v_b,
            proj_w=proj_w, proj_b=proj_b,
            gate_w=gate_w, gate_b=gate_b, up_w=up_w, up_b=up_b,
            down_w=down_w, down_b=down_b))
    k1, k2 = jax.random.split(keys[cfg["depth"] + 1])
    fc1_w, fc1_b = lin(k1, mh, mh)
    fc2_w, fc2_b = lin(k2, mh, cfg["out_hidden_size"])
    params["merger_lnq_w"] = jnp.ones((hd,), jnp.float32)
    params["merger_fc1_w"], params["merger_fc1_b"] = fc1_w, fc1_b
    params["merger_fc2_w"], params["merger_fc2_b"] = fc2_w, fc2_b
    return params


def prepare_params(params, cfg):
    """Concatenate QKV, pad the intermediate dim to a 256-multiple, cast to
    bf16/f32 -- done ONCE so forward never pads/casts weights per call."""
    hd = cfg["hidden_size"]
    inter = cfg["intermediate_size"]
    inter_p = inter if inter % 256 == 0 else _ceil_to(inter, 256)
    prep = {"inter_p": inter_p,
            "patch_embed_w": params["patch_embed_w"].astype(DTYPE),
            "blocks": []}
    for bp in params["blocks"]:
        qkv_w = jnp.concatenate([bp["q_w"], bp["k_w"], bp["v_w"]], axis=1).astype(DTYPE)
        qkv_b = jnp.concatenate([bp["q_b"], bp["k_b"], bp["v_b"]]).astype(jnp.float32)
        prep["blocks"].append(dict(
            norm1_w=bp["norm1_w"].astype(jnp.float32),
            norm2_w=bp["norm2_w"].astype(jnp.float32),
            qkv_w=qkv_w, qkv_b=qkv_b,
            proj_w=bp["proj_w"].astype(DTYPE),
            proj_b=bp["proj_b"].astype(jnp.float32),
            gate_w=_pad2(bp["gate_w"], hd, inter_p).astype(DTYPE),
            up_w=_pad2(bp["up_w"], hd, inter_p).astype(DTYPE),
            gate_b=jnp.pad(bp["gate_b"], (0, inter_p - inter)).astype(jnp.float32),
            up_b=jnp.pad(bp["up_b"], (0, inter_p - inter)).astype(jnp.float32),
            down_w=_pad2(bp["down_w"], inter_p, hd).astype(DTYPE),
            down_b=bp["down_b"].astype(jnp.float32)))
    prep["merger_lnq_w"] = params["merger_lnq_w"].astype(jnp.float32)
    prep["merger_fc1_w"] = params["merger_fc1_w"].astype(DTYPE)
    prep["merger_fc1_b"] = params["merger_fc1_b"].astype(jnp.float32)
    prep["merger_fc2_w"] = params["merger_fc2_w"].astype(DTYPE)
    prep["merger_fc2_b"] = params["merger_fc2_b"].astype(jnp.float32)
    return prep


# ----------------------------------------------------------------------------
# Forward
# ----------------------------------------------------------------------------
def vision_forward(prep, pixel, rpe_np, window_index_np, reverse_index,
                   seg_full_np, seg_window_np, cfg):
    hd = cfg["hidden_size"]
    H = cfg["num_heads"]
    D = hd // H
    half = D // 2
    smu = cfg["spatial_merge_unit"]
    scale = float(D) ** -0.5

    # --- patch embed (Conv3d with kernel==stride == matmul, no bias) ---------
    hs = fused_matmul(pixel, prep["patch_embed_w"])            # (S, hd)
    S = hs.shape[0]

    # --- window reorder --------------------------------------------------------
    wi = jnp.asarray(window_index_np, jnp.int32)
    hs = hs.reshape(S // smu, smu, -1)[wi].reshape(S, -1)
    rpe = np.asarray(rpe_np, np.float32)
    rpe = rpe.reshape(S // smu, smu, -1)[np.asarray(window_index_np)].reshape(S, -1)
    rpe = np.tile(rpe, (1, 2))                                 # (S, head_dim)
    cos_np = np.cos(rpe).astype(np.float32)
    sin_np = np.sin(rpe).astype(np.float32)
    # sign-folded sin so rotate_half becomes a plain half-roll in the kernel
    sin_signed_np = np.concatenate([-sin_np[:, :half], sin_np[:, half:]], axis=-1)

    # --- pad rows ONCE to a tiling-friendly Sp --------------------------------
    Sp, tq, tkv = _row_plan(S)
    pad = Sp - S
    hs = jnp.pad(hs, ((0, pad), (0, 0)))
    cos = jnp.asarray(np.pad(cos_np, ((0, pad), (0, 0))))
    sin_signed = jnp.asarray(np.pad(sin_signed_np, ((0, pad), (0, 0))))

    meta_full = _attn_meta(seg_full_np, S, Sp, tq, tkv)
    meta_win = _attn_meta(seg_window_np, S, Sp, tq, tkv)

    # --- transformer blocks -----------------------------------------------------
    for li, bp in enumerate(prep["blocks"]):
        meta = meta_full if li in cfg["fullatt_block_indexes"] else meta_win

        # fused RMSNorm(norm1) + QKV projection
        qkv = fused_matmul(hs, bp["qkv_w"], bp["qkv_b"], rms_w=bp["norm1_w"])
        qkv = jnp.transpose(qkv.reshape(Sp, 3, H, D), (1, 2, 0, 3))   # (3,H,Sp,D)
        q, k, v = qkv[0], qkv[1], qkv[2]

        q, k = apply_rope(q, k, cos, sin_signed, scale, tq)
        attn = flash_attention(q, k, v, meta)                  # (H, Sp, D)
        attn = jnp.transpose(attn, (1, 0, 2)).reshape(Sp, hd)
        hs = fused_matmul(attn, bp["proj_w"], bp["proj_b"], residual=hs)

        # fused RMSNorm(norm2) + gate/up + SiluAndMul; residual fused into down
        act = fused_gate_up(hs, bp["gate_w"], bp["up_w"], bp["gate_b"], bp["up_b"],
                            rms_w=bp["norm2_w"])
        hs = fused_matmul(act, bp["down_w"], bp["down_b"], residual=hs)

    # --- patch merger ------------------------------------------------------------
    x = rmsnorm(hs, prep["merger_lnq_w"], eps=1e-6)
    x = x.reshape(Sp // smu, hd * smu)
    x = fused_matmul(x, prep["merger_fc1_w"], prep["merger_fc1_b"])
    # TODO(synk): exact erf-GELU kept in plain JAX (Mosaic erf in an epilogue is
    # uncertain); matches torch.nn.GELU() default.
    x = jax.nn.gelu(x.astype(jnp.float32), approximate=False).astype(x.dtype)
    x = fused_matmul(x, prep["merger_fc2_w"], prep["merger_fc2_b"])
    x = x[: S // smu]

    # --- undo window reorder (host-precomputed argsort) ---------------------------
    return x[reverse_index]


# ----------------------------------------------------------------------------
# main
# ----------------------------------------------------------------------------
if __name__ == "__main__":
    cfg = dict(
        patch_size=2,
        temporal_patch_size=2,
        in_channels=3,
        hidden_size=32,
        num_heads=4,
        intermediate_size=64,
        depth=2,
        out_hidden_size=48,
        spatial_merge_size=2,
        window_size=8,               # -> vit_merger_window_size = 2
        fullatt_block_indexes=(0,),
    )
    cfg["spatial_merge_unit"] = cfg["spatial_merge_size"] ** 2
    head_dim = cfg["hidden_size"] // cfg["num_heads"]

    grid_thw = np.array([[1, 8, 8]], dtype=np.int64)            # one image
    seq_len = int(np.prod(grid_thw, axis=1).sum())               # 64
    in_dim = cfg["in_channels"] * cfg["temporal_patch_size"] * cfg["patch_size"] ** 2

    # host-side precompute (mirrors rot_pos_emb / get_window_index of reference)
    rpe = rot_pos_emb_np(grid_thw, head_dim, cfg["spatial_merge_size"])
    window_index, cu_window_seqlens = get_window_index_np(
        grid_thw, cfg["window_size"], cfg["spatial_merge_size"],
        cfg["patch_size"], cfg["spatial_merge_unit"])
    reverse_index = np.argsort(window_index).astype(np.int32)
    cu_seqlens = np.cumsum(np.prod(grid_thw, axis=1))             # per-image
    cu_seqlens_full = np.concatenate([[0], cu_seqlens])           # F.pad((1,0))

    seg_full = seg_from_cu(cu_seqlens_full, seq_len)
    seg_window = seg_from_cu(np.asarray(cu_window_seqlens), seq_len)

    key = jax.random.PRNGKey(0)
    kp, kx = jax.random.split(key)
    params = init_params(kp, cfg)
    prep = prepare_params(params, cfg)
    pixel = jax.random.normal(kx, (seq_len, in_dim), jnp.float32).astype(DTYPE)

    out = vision_forward(
        prep, pixel, rpe,
        np.asarray(window_index, np.int32),
        jnp.asarray(reverse_index),
        seg_full, seg_window, cfg)
    out = jax.block_until_ready(out)

    expected_rows = seq_len // cfg["spatial_merge_unit"]
    assert out.shape == (expected_rows, cfg["out_hidden_size"]), out.shape
    assert bool(jnp.all(jnp.isfinite(out.astype(jnp.float32))))
    print("KERNEL_OK")
</pallas_src>

<mosaic_0001>
module attributes {stable_mosaic.version = 11 : i64} {
  func.func @_mm_kernel(%arg0: i32, %arg1: i32, %arg2: i32, %arg3: memref<64x24xbf16, #tpu.memory_space<vmem>>, %arg4: memref<24x32xbf16, #tpu.memory_space<vmem>>, %arg5: memref<64x32xbf16, #tpu.memory_space<vmem>>, %arg6: memref<64x32xf32, #tpu.memory_space<vmem>>) attributes {dimension_semantics = [#tpu.dimension_semantics<parallel>, #tpu.dimension_semantics<parallel>, #tpu.dimension_semantics<arbitrary>], iteration_bounds = array<i64: 1, 1, 1>, scalar_prefetch = 0 : i64, scratch_operands = 1 : i64, tpu.core_type = #tpu.core_type<tc>, window_params = [{transform_indices = @transform_0, window_bounds = array<i64: 64, 24>}, {transform_indices = @transform_1, window_bounds = array<i64: 24, 32>}, {transform_indices = @transform_2, window_bounds = array<i64: 64, 32>}]} {
    %c0_i32 = arith.constant 0 : i32
    %0 = arith.cmpi eq, %arg2, %c0_i32 : i32
    %1 = arith.extui %0 : i1 to i32
    %c0_i32_0 = arith.constant 0 : i32
    %2 = arith.cmpi ne, %1, %c0_i32_0 : i32
    scf.if %2 {
      %cst_10 = arith.constant 0.000000e+00 : f32
      %12 = vector.broadcast %cst_10 : f32 to vector<64x32xf32>
      %c0_11 = arith.constant 0 : index
      %c0_12 = arith.constant 0 : index
      %13 = vector.load %arg6[%c0_11, %c0_12] : memref<64x32xf32, #tpu.memory_space<vmem>>, vector<64x32xf32>
      tpu.vector_store %arg6[%c0_11, %c0_12], %12 {strides = array<i32>} : memref<64x32xf32, #tpu.memory_space<vmem>>, vector<64x32xf32>,
    } else {
    }
    %c0 = arith.constant 0 : index
    %c0_1 = arith.constant 0 : index
    %3 = vector.load %arg3[%c0, %c0_1] : memref<64x24xbf16, #tpu.memory_space<vmem>>, vector<64x24xbf16>
    %c0_2 = arith.constant 0 : index
    %c0_3 = arith.constant 0 : index
    %4 = vector.load %arg6[%c0_2, %c0_3] : memref<64x32xf32, #tpu.memory_space<vmem>>, vector<64x32xf32>
    %c0_4 = arith.constant 0 : index
    %c0_5 = arith.constant 0 : index
    %5 = vector.load %arg4[%c0_4, %c0_5] : memref<24x32xbf16, #tpu.memory_space<vmem>>, vector<24x32xbf16>
    %cst = arith.constant dense<0.000000e+00> : vector<64x32xf32>
    %6 = tpu.matmul %3, %5, %cst {dimension_numbers = #tpu.dot_dimension_numbers<[1], [0], [0], [1], [0, 0, 1, 1], [], []>} : vector<64x24xbf16>, vector<24x32xbf16>, vector<64x32xf32> -> vector<64x32xf32>
    %7 = arith.addf %4, %6 : vector<64x32xf32>
    %c0_6 = arith.constant 0 : index
    %c0_7 = arith.constant 0 : index
    %8 = vector.load %arg6[%c0_6, %c0_7] : memref<64x32xf32, #tpu.memory_space<vmem>>, vector<64x32xf32>
    tpu.vector_store %arg6[%c0_6, %c0_7], %7 {strides = array<i32>} : memref<64x32xf32, #tpu.memory_space<vmem>>, vector<64x32xf32>,
    %c0_i32_8 = arith.constant 0 : i32
    %9 = arith.cmpi eq, %arg2, %c0_i32_8 : i32
    %10 = arith.extui %9 : i1 to i32
    %c0_i32_9 = arith.constant 0 : i32
    %11 = arith.cmpi ne, %10, %c0_i32_9 : i32
    scf.if %11 {
      %c0_10 = arith.constant 0 : index
      %c0_11 = arith.constant 0 : index
      %12 = vector.load %arg6[%c0_10, %c0_11] : memref<64x32xf32, #tpu.memory_space<vmem>>, vector<64x32xf32>
      %13 = arith.truncf %12 : vector<64x32xf32> to vector<64x32xbf16>
      %c0_12 = arith.constant 0 : index
      %c0_13 = arith.constant 0 : index
      %14 = vector.load %arg5[%c0_12, %c0_13] : memref<64x32xbf16, #tpu.memory_space<vmem>>, vector<64x32xbf16>
      tpu.vector_store %arg5[%c0_12, %c0_13], %13 {strides = array<i32>} : memref<64x32xbf16, #tpu.memory_space<vmem>>, vector<64x32xbf16>,
    } else {
    }
    return
  }
  func.func @transform_0(%arg0: i32, %arg1: i32, %arg2: i32) -> (i32, i32) {
    %c0_i32 = arith.constant 0 : i32
    return %arg0, %arg2 : i32, i32
  }
  func.func @transform_1(%arg0: i32, %arg1: i32, %arg2: i32) -> (i32, i32) {
    %c0_i32 = arith.constant 0 : i32
    return %arg2, %arg1 : i32, i32
  }
  func.func @transform_2(%arg0: i32, %arg1: i32, %arg2: i32) -> (i32, i32) {
    %c0_i32 = arith.constant 0 : i32
    return %arg0, %arg1 : i32, i32
  }
}

</mosaic_0001>

<llo_original>
// kernel: tpu_custom_call.1
$region0: #{tpu_custom_call.1}
  #allocation0 [shape = 'u32[]', space=smem, size = 0x4, offset = 0x4, fixed_abs, tag = 'smem constant byte address 0x4 - core index']
  #allocation1 [shape = 'u32[144,128]{1,0:T(1,128)}', space=vmem, size = 0x12000, scoped, tag = 'internal scratch']
  #allocation2 [shape = 'f32[64,32]{1,0:T(8,128)}', space=vmem, size = 0x8000, scoped, tag = 'scratch operand']
  %s0 = inlined_call_operand.vmem [shape: bf16[64,24], index: 0, kind: input, shape index: {}]
  %s1 = inlined_call_operand.vmem [shape: bf16[24,32], index: 1, kind: input, shape index: {}]
  %s2 = inlined_call_operand.vmem [shape: bf16[64,32], index: 2, kind: output, shape index: {}]
  %s3 = sld [smem:[#allocation0]]
  $region26: #{tpu_custom_call.1} parent=0
    _
  %s5 = ssub.s32 1, %s3
  %s6 = scalar_select 0, %s5, %s3
  // Predicated region
  $region2: #{tpu_custom_call.1} parent=0 // pred_check
    _
  $region3: #{tpu_custom_call.1} parent=0 // pred_check_branch
    %8 = sbr.rel (0) target = $region5
  $region4: #{tpu_custom_call.1} parent=0 // pred_region
    _
  $region5: #{tpu_custom_call.1} parent=0 // pred_fallthru
    _
  // Predicated region
  $region6: #{tpu_custom_call.1} parent=0 // pred_check
    _
  $region7: #{tpu_custom_call.1} parent=0 // pred_check_branch
    %10 = sbr.rel (0) target = $region9
  $region8: #{tpu_custom_call.1} parent=0 // pred_region
    _
  $region9: #{tpu_custom_call.1} parent=0 // pred_fallthru
    _
  %p12 = scmp.eq.s32.totalorder 0, 0
  // Predicated region
  $region10: #{tpu_custom_call.1} parent=0 // pred_check
    %p13 = pneg %p12
  $region11: #{tpu_custom_call.1} parent=0 // pred_check_branch
    %15 = sbr.rel (%p13) target = $region13
  $region12: #{tpu_custom_call.1} parent=0 // pred_region
    %vm16 = vcmask 261120
    %17 = vst.msk [vmem:[#allocation2] sm:$0xff] %vm16, 0.0
    %18 = vst.msk [vmem:[#allocation2 + $0x8] sm:$0xff] %vm16, 0.0
    %19 = vst.msk [vmem:[#allocation2 + $0x10] sm:$0xff] %vm16, 0.0
    %20 = vst.msk [vmem:[#allocation2 + $0x18] sm:$0xff] %vm16, 0.0
    %21 = vst.msk [vmem:[#allocation2 + $0x20] sm:$0xff] %vm16, 0.0
    %22 = vst.msk [vmem:[#allocation2 + $0x28] sm:$0xff] %vm16, 0.0
    %23 = vst.msk [vmem:[#allocation2 + $0x30] sm:$0xff] %vm16, 0.0
    %24 = vst.msk [vmem:[#allocation2 + $0x38] sm:$0xff] %vm16, 0.0
  $region13: #{tpu_custom_call.1} parent=0 // pred_fallthru
    _
  %v25 = vld [vmem:[%s0] sm:$0xf]
  %v26 = vld [vmem:[%s0 + $0x4] sm:$0xf]
  %v27 = vld [vmem:[%s0 + $0x8] sm:$0xf]
  %v28 = vld [vmem:[%s0 + $0xc] sm:$0xf]
  %v29 = vld [vmem:[%s0 + $0x10] sm:$0xf]
  %v30 = vld [vmem:[%s0 + $0x14] sm:$0xf]
  %v31 = vld [vmem:[%s0 + $0x18] sm:$0xf]
  %v32 = vld [vmem:[%s0 + $0x1c] sm:$0xf]
  %v33 = vld [vmem:[#allocation2] sm:$0xff]
  %v34 = vld [vmem:[#allocation2 + $0x8] sm:$0xff]
  %v35 = vld [vmem:[#allocation2 + $0x10] sm:$0xff]
  %v36 = vld [vmem:[#allocation2 + $0x18] sm:$0xff]
  %v37 = vld [vmem:[#allocation2 + $0x20] sm:$0xff]
  %v38 = vld [vmem:[#allocation2 + $0x28] sm:$0xff]
  %v39 = vld [vmem:[#allocation2 + $0x30] sm:$0xff]
  %v40 = vld [vmem:[#allocation2 + $0x38] sm:$0xff]
  %v41 = vld [vmem:[%s1] sm:$0xf]
  %v42 = vld [vmem:[%s1 + $0x4] sm:$0xf]
  %v43 = vld [vmem:[%s1 + $0x8] sm:$0xf]
  %v52 = vunpack.c.l.b16 %v25
  %v53 = vunpack.c.l.b16 %v26
  %v54 = vunpack.c.l.b16 %v27
  %v55 = vunpack.c.l.b16 %v28
  %v56 = vunpack.c.l.b16 %v29
  %v57 = vunpack.c.l.b16 %v30
  %v58 = vunpack.c.l.b16 %v31
  %v59 = vunpack.c.l.b16 %v32
  %v60 = vpack.c.b16 %v53, %v52
  %v61 = vpack.c.b16 %v55, %v54
  %v62 = vpack.c.b16 %v57, %v56
  %v63 = vpack.c.b16 %v59, %v58
  %v67 = vunpack.c.l.b16 %v41
  %v68 = vunpack.c.l.b16 %v42
  %v69 = vunpack.c.l.b16 %v43
  %v70 = vpack.c.b16 %v68, %v67
  %v71 = vpack.c.b16 %v69, %v69
  %vm73 = vcmask 195584
  %v75 = vsel %vm73, %v60, 0
  %v78 = vsel %vm73, %v61, 0
  %v81 = vsel %vm73, %v62, 0
  %v84 = vsel %vm73, %v63, 0
  %vm86 = vcmask 1043456
  %v88 = vsel %vm86, %v71, 0
  %90 = vmatprep.subr.bf16.mxu0 0
  %91 = vmatpush1.bf16.msra.mxu0 %v70
  %92 = vmatprep.subr.bf16.mxu0 0
  %93 = vmatpush1.bf16.msra.mxu0 %v88
  %94 = vmatprep.subr.bf16.mxu0 0
  %95 = vmatpush1.bf16.msra.mxu0 0
  %96 = vmatprep.subr.bf16.mxu0 0
  %97 = vmatpush1.bf16.msra.mxu0 0
  %98 = vmatprep.subr.bf16.mxu0 0
  %99 = vmatpush1.bf16.msra.mxu0 0
  %100 = vmatprep.subr.bf16.mxu0 0
  %101 = vmatpush1.bf16.msra.mxu0 0
  %102 = vmatprep.subr.bf16.mxu0 0
  %103 = vmatpush1.bf16.msra.mxu0 0
  %104 = vmatprep.subr.bf16.mxu0 0
  %105 = vmatpush1.bf16.msra.mxu0 0
  %106 = vmatprep.subr.bf16.mxu0 0
  %107 = vmatpush1.bf16.msra.mxu0 0
  %108 = vmatprep.subr.bf16.mxu0 0
  %109 = vmatpush1.bf16.msra.mxu0 0
  %110 = vmatprep.subr.bf16.mxu0 0
  %111 = vmatpush1.bf16.msra.mxu0 0
  %112 = vmatprep.subr.bf16.mxu0 0
  %113 = vmatpush1.bf16.msra.mxu0 0
  %114 = vmatprep.subr.bf16.mxu0 0
  %115 = vmatpush1.bf16.msra.mxu0 0
  %116 = vmatprep.subr.bf16.mxu0 0
  %117 = vmatpush1.bf16.msra.mxu0 0
  %118 = vmatprep.subr.bf16.mxu0 0
  %119 = vmatpush1.bf16.msra.mxu0 0
  %120 = vmatprep.subr.bf16.mxu0 0
  %121 = vmatpush1.bf16.msra.mxu0 0
  %122 = vmatprep.mubr.bf16.mxu0 0
  %123 = vmatmul.mubr.bf16.gmra.mrb[0].mxu0 %v75
  %v124 = vpop.f32.mrb[0].mxu0
  %v125 = vadd.f32 0.0, %v124
  %v126 = vpop.f32.mrb[0].mxu0
  %v127 = vpop.f32.mrb[0].mxu0
  %v128 = vadd.f32 0.0, %v127
  %v129 = vpop.f32.mrb[0].mxu0
  %130 = vmatprep.mubr.bf16.mxu0 0
  %131 = vmatmul.mubr.bf16.gmra.mrb[0].mxu0 %v78
  %v132 = vpop.f32.mrb[0].mxu0
  %v133 = vadd.f32 0.0, %v132
  %v134 = vpop.f32.mrb[0].mxu0
  %v135 = vpop.f32.mrb[0].mxu0
  %v136 = vadd.f32 0.0, %v135
  %v137 = vpop.f32.mrb[0].mxu0
  %138 = vmatprep.mubr.bf16.mxu0 0
  %139 = vmatmul.mubr.bf16.gmra.mrb[0].mxu0 %v81
  %v140 = vpop.f32.mrb[0].mxu0
  %v141 = vadd.f32 0.0, %v140
  %v142 = vpop.f32.mrb[0].mxu0
  %v143 = vpop.f32.mrb[0].mxu0
  %v144 = vadd.f32 0.0, %v143
  %v145 = vpop.f32.mrb[0].mxu0
  %146 = vmatprep.mubr.bf16.mxu0 0
  %147 = vmatmul.mubr.bf16.gmra.mrb[0].mxu0 %v84
  %v148 = vpop.f32.mrb[0].mxu0
  %v149 = vadd.f32 0.0, %v148
  %v150 = vpop.f32.mrb[0].mxu0
  %v151 = vpop.f32.mrb[0].mxu0
  %v152 = vadd.f32 0.0, %v151
  %v153 = vpop.f32.mrb[0].mxu0
  %154 = vdwg.mxu0
  %v155 = vadd.f32 %v33, %v125
  %v156 = vadd.f32 %v34, %v128
  %v157 = vadd.f32 %v35, %v133
  %v158 = vadd.f32 %v36, %v136
  %v159 = vadd.f32 %v37, %v141
  %v160 = vadd.f32 %v38, %v144
  %v161 = vadd.f32 %v39, %v149
  %v162 = vadd.f32 %v40, %v152
  %vm163 = vcmask 261120
  %164 = vst.msk [vmem:[#allocation2] sm:$0xff] %vm163, %v155
  %165 = vst.msk [vmem:[#allocation2 + $0x8] sm:$0xff] %vm163, %v156
  %166 = vst.msk [vmem:[#allocation2 + $0x10] sm:$0xff] %vm163, %v157
  %167 = vst.msk [vmem:[#allocation2 + $0x18] sm:$0xff] %vm163, %v158
  %168 = vst.msk [vmem:[#allocation2 + $0x20] sm:$0xff] %vm163, %v159
  %169 = vst.msk [vmem:[#allocation2 + $0x28] sm:$0xff] %vm163, %v160
  %170 = vst.msk [vmem:[#allocation2 + $0x30] sm:$0xff] %vm163, %v161
  %171 = vst.msk [vmem:[#allocation2 + $0x38] sm:$0xff] %vm163, %v162
  // Predicated region
  $region14: #{tpu_custom_call.1} parent=0 // pred_check
    %p172 = pneg %p12
  $region15: #{tpu_custom_call.1} parent=0 // pred_check_branch
    %174 = sbr.rel (%p172) target = $region17
  $region16: #{tpu_custom_call.1} parent=0 // pred_region
    %v175 = vld [vmem:[#allocation2] sm:$0xff]
    %v176 = vld [vmem:[#allocation2 + $0x8] sm:$0xff]
    %v177 = vld [vmem:[#allocation2 + $0x10] sm:$0xff]
    %v178 = vld [vmem:[#allocation2 + $0x18] sm:$0xff]
    %v179 = vld [vmem:[#allocation2 + $0x20] sm:$0xff]
    %v180 = vld [vmem:[#allocation2 + $0x28] sm:$0xff]
    %v181 = vld [vmem:[#allocation2 + $0x30] sm:$0xff]
    %v182 = vld [vmem:[#allocation2 + $0x38] sm:$0xff]
    %v183 = vpack.c.bf16 %v176, %v175
    %v184 = vpack.c.bf16 %v178, %v177
    %v185 = vpack.c.bf16 %v180, %v179
    %v186 = vpack.c.bf16 %v182, %v181
    %v191 = vunpack.c.l.b16 %v183
    %v192 = vunpack.c.h.b16 %v183
    %v193 = vunpack.c.l.b16 %v184
    %v194 = vunpack.c.h.b16 %v184
    %v195 = vunpack.c.l.b16 %v185
    %v196 = vunpack.c.h.b16 %v185
    %v197 = vunpack.c.l.b16 %v186
    %v198 = vunpack.c.h.b16 %v186
    %v199 = vpack.c.b16 %v191, %v191
    %v200 = vpack.c.b16 %v192, %v192
    %v201 = vpack.c.b16 %v193, %v193
    %v202 = vpack.c.b16 %v194, %v194
    %v203 = vpack.c.b16 %v195, %v195
    %v204 = vpack.c.b16 %v196, %v196
    %v205 = vpack.c.b16 %v197, %v197
    %v206 = vpack.c.b16 %v198, %v198
    %vm215 = vcmask 257024
    %216 = vst.msk [vmem:[%s2] sm:$0xf] %vm215, %v199
    %217 = vst.msk [vmem:[%s2 + $0x4] sm:$0xf] %vm215, %v200
    %218 = vst.msk [vmem:[%s2 + $0x8] sm:$0xf] %vm215, %v201
    %219 = vst.msk [vmem:[%s2 + $0xc] sm:$0xf] %vm215, %v202
    %220 = vst.msk [vmem:[%s2 + $0x10] sm:$0xf] %vm215, %v203
    %221 = vst.msk [vmem:[%s2 + $0x14] sm:$0xf] %vm215, %v204
    %222 = vst.msk [vmem:[%s2 + $0x18] sm:$0xf] %vm215, %v205
    %223 = vst.msk [vmem:[%s2 + $0x1c] sm:$0xf] %vm215, %v206
  $region17: #{tpu_custom_call.1} parent=0 // pred_fallthru
    _
  // Predicated region
  $region18: #{tpu_custom_call.1} parent=0 // pred_check
    _
  $region19: #{tpu_custom_call.1} parent=0 // pred_check_branch
    %225 = sbr.rel (0) target = $region21
  $region20: #{tpu_custom_call.1} parent=0 // pred_region
    _
  $region21: #{tpu_custom_call.1} parent=0 // pred_fallthru
    _
  // Predicated region
  $region22: #{tpu_custom_call.1} parent=0 // pred_check
    _
  $region23: #{tpu_custom_call.1} parent=0 // pred_check_branch
    %227 = sbr.rel (0) target = $region25
  $region24: #{tpu_custom_call.1} parent=0 // pred_region
    _
  $region25: #{tpu_custom_call.1} parent=0 // pred_fallthru
    _

</llo_original>
